<compile_context>
chip_gen: v5e
topology: v5e:2x2
jax: 0.10.0
libtpu: 0.0.40
codegen_flags: <defaults>
</compile_context>

<pallas_src>
import math

import jax
import jax.numpy as jnp
from jax import lax
from jax.experimental import pallas as pl
from jax.experimental.pallas import tpu as pltpu

# ------------------------- model hyper-parameters ---------------------------
B = 2          # batch
S = 8          # sequence length
H = 32         # hidden size
NUM_HEADS = 2
DH = H // NUM_HEADS
I = 64         # FFN intermediate size
C = 4          # num_classes
VOCAB = 100
VOCAB_PAD = 128    # embedding table padded to 128 rows for the one-hot matmul
LN_EPS = 1e-12
T = B * S          # flattened tokens, (seq, batch)-major -> CLS rows are 0..B-1
OUT_PAD = 128      # lane-dense logits block; sliced to C in the wrapper

# ---- packed bf16 weight buffer: every matrix at a 128-aligned column --------
WQ_COL = 0       # (H, H)   cols   0: 32
WK_COL = 128     # (H, H)   cols 128:160
WV_COL = 256     # (H, H)   cols 256:288
WO_COL = 384     # (H, H)   cols 384:416
WI_COL = 512     # (H, I)   cols 512:576
WP_COL = 640     # (H, H)   cols 640:672
WC_COL = 768     # (H, C) zero-padded to cols 768:896
WF_COL = 896     # (I, H)   cols 896:928  (rows 0:I)
W_ROWS = max(H, I)        # 64
W_COLS = 1024

# ---- packed f32 bias / LayerNorm / head-mask buffer: one vector per row -----
(R_BQ, R_BK, R_BV, R_BO, R_G1, R_B1, R_BI, R_BF, R_G2, R_B2, R_BP, R_BC) = range(12)
R_HM = 12                       # NUM_HEADS rows of 0/1 head-membership masks
V_ROWS = R_HM + NUM_HEADS
V_COLS = 128


# ------------------------------ kernel helpers -------------------------------
def _layernorm(x, gamma, beta):
    mu = jnp.mean(x, axis=-1, keepdims=True)
    var = jnp.mean((x - mu) * (x - mu), axis=-1, keepdims=True)
    return (x - mu) * lax.rsqrt(var + LN_EPS) * gamma + beta


def _gelu(x):
    # TODO(synk): HF BERT's default activation is exact erf GELU; the tanh
    # ("gelu_new") approximation is kept for lowering safety.
    c = math.sqrt(2.0 / math.pi)
    return 0.5 * x * (1.0 + jnp.tanh(c * (x + 0.044715 * x * x * x)))


# ------------------------------ Pallas kernel --------------------------------
def text_classifier_kernel(ids_ref, emb_ref, pos_ref, amask_ref, w_ref, vec_ref,
                           out_ref):
    # ids_ref:   (T, 1)            int32 token ids, (seq, batch)-major rows
    # emb_ref:   (VOCAB_PAD, H)    f32 word-embedding table (zero padded rows)
    # pos_ref:   (T, H)            f32 position embeddings, same row order
    # amask_ref: (NUM_HEADS*B, T)  f32 additive attention mask (0 / -1e9)
    # w_ref:     (W_ROWS, W_COLS)  bf16 packed weight matrices
    # vec_ref:   (V_ROWS, V_COLS)  f32 packed biases / LN params / head masks
    # out_ref:   (B, OUT_PAD)      f32 lane-padded logits

    # ---- embedding gather as a one-hot MXU matmul (no dynamic indexing) ----
    ids = ids_ref[...]                                             # (T, 1)
    vocab_iota = lax.broadcasted_iota(jnp.int32, (T, VOCAB_PAD), 1)
    onehot = (vocab_iota == ids).astype(jnp.float32)               # (T, VOCAB_PAD)
    x2 = jnp.dot(onehot, emb_ref[...],
                 preferred_element_type=jnp.float32) + pos_ref[...]   # (T, H) f32
    x2_b = x2.astype(jnp.bfloat16)
    x_cls = x2[0:B, :]                       # CLS tokens = first B rows (aligned)

    # ---- Q (CLS only) / K / V projections: bf16 MXU, f32 accumulation ----
    inv_sqrt_dh = 1.0 / math.sqrt(DH)
    wq = w_ref[0:H, WQ_COL:WQ_COL + H]
    wk = w_ref[0:H, WK_COL:WK_COL + H]
    wv = w_ref[0:H, WV_COL:WV_COL + H]
    bq = vec_ref[R_BQ:R_BQ + 1, 0:H]
    bk = vec_ref[R_BK:R_BK + 1, 0:H]
    bv = vec_ref[R_BV:R_BV + 1, 0:H]

    q_cls = (jnp.dot(x2_b[0:B, :], wq, preferred_element_type=jnp.float32)
             + bq) * inv_sqrt_dh                                   # (B, H)
    k = jnp.dot(x2_b, wk, preferred_element_type=jnp.float32) + bk  # (T, H)
    v = jnp.dot(x2_b, wv, preferred_element_type=jnp.float32) + bv  # (T, H)

    # ---- multi-head attention as flat 2-D matmuls (head-major score rows) ----
    # qp row n*B + b = q_cls[b] masked to head n's feature slots.
    qp = jnp.concatenate(
        [q_cls * vec_ref[R_HM + n:R_HM + n + 1, 0:H] for n in range(NUM_HEADS)],
        axis=0)                                                    # (NH*B, H)

    scores = lax.dot_general(qp.astype(jnp.bfloat16), k.astype(jnp.bfloat16),
                             (((1,), (1,)), ((), ())),
                             preferred_element_type=jnp.float32)   # (NH*B, T)
    scores = scores + amask_ref[...]        # cross-batch + padding mask (additive)

    m = jnp.max(scores, axis=-1, keepdims=True)
    e = jnp.exp(scores - m)
    probs = e * pl.reciprocal(jnp.sum(e, axis=-1, keepdims=True), approx=False)

    ctx_h = jnp.dot(probs.astype(jnp.bfloat16), v.astype(jnp.bfloat16),
                    preferred_element_type=jnp.float32)            # (NH*B, H)
    ctx = ctx_h[0:B, :] * vec_ref[R_HM:R_HM + 1, 0:H]
    for n in range(1, NUM_HEADS):
        ctx = ctx + ctx_h[n * B:(n + 1) * B, :] * vec_ref[R_HM + n:R_HM + n + 1, 0:H]

    wo = w_ref[0:H, WO_COL:WO_COL + H]
    bo = vec_ref[R_BO:R_BO + 1, 0:H]
    attn_out = jnp.dot(ctx.astype(jnp.bfloat16), wo,
                       preferred_element_type=jnp.float32) + bo     # (B, H)

    g1 = vec_ref[R_G1:R_G1 + 1, 0:H]
    b1 = vec_ref[R_B1:R_B1 + 1, 0:H]
    h1 = _layernorm(x_cls + attn_out, g1, b1)                       # (B, H) f32

    # ---- CLS-only feed-forward + second LayerNorm ----
    wi = w_ref[0:H, WI_COL:WI_COL + I]
    bi = vec_ref[R_BI:R_BI + 1, 0:I]
    ff = _gelu(jnp.dot(h1.astype(jnp.bfloat16), wi,
                       preferred_element_type=jnp.float32) + bi)    # (B, I)

    wf = w_ref[0:I, WF_COL:WF_COL + H]
    bf = vec_ref[R_BF:R_BF + 1, 0:H]
    ff = jnp.dot(ff.astype(jnp.bfloat16), wf,
                 preferred_element_type=jnp.float32) + bf           # (B, H)

    g2 = vec_ref[R_G2:R_G2 + 1, 0:H]
    b2 = vec_ref[R_B2:R_B2 + 1, 0:H]
    h2 = _layernorm(h1 + ff, g2, b2)                                # (B, H)

    # ---- pooler: tanh(W_p @ CLS + b_p) ----
    wp = w_ref[0:H, WP_COL:WP_COL + H]
    bp = vec_ref[R_BP:R_BP + 1, 0:H]
    pooled = jnp.tanh(jnp.dot(h2.astype(jnp.bfloat16), wp,
                              preferred_element_type=jnp.float32) + bp)

    # ---- classifier head, lane-dense (B, 128) store ----
    wc = w_ref[0:H, WC_COL:WC_COL + OUT_PAD]
    bc = vec_ref[R_BC:R_BC + 1, 0:OUT_PAD]
    logits = jnp.dot(pooled.astype(jnp.bfloat16), wc,
                     preferred_element_type=jnp.float32) + bc
    out_ref[...] = logits.astype(out_ref.dtype)


# ------------------------------ wrapper ---------------------------------------
def pack_params(params):
    """Collapse all weights/biases into packed buffers (plain JAX, host side)."""
    w_all = jnp.zeros((W_ROWS, W_COLS), jnp.float32)
    w_all = w_all.at[0:H, WQ_COL:WQ_COL + H].set(params["wq"])
    w_all = w_all.at[0:H, WK_COL:WK_COL + H].set(params["wk"])
    w_all = w_all.at[0:H, WV_COL:WV_COL + H].set(params["wv"])
    w_all = w_all.at[0:H, WO_COL:WO_COL + H].set(params["wo"])
    w_all = w_all.at[0:H, WI_COL:WI_COL + I].set(params["wi"])
    w_all = w_all.at[0:H, WP_COL:WP_COL + H].set(params["wp"])
    w_all = w_all.at[0:H, WC_COL:WC_COL + C].set(params["wc"])
    w_all = w_all.at[0:I, WF_COL:WF_COL + H].set(params["wf"])
    w_all = w_all.astype(jnp.bfloat16)   # bf16 MXU operands, f32 accumulation

    vecs = jnp.zeros((V_ROWS, V_COLS), jnp.float32)
    vecs = vecs.at[R_BQ, 0:H].set(params["bq"][0])
    vecs = vecs.at[R_BK, 0:H].set(params["bk"][0])
    vecs = vecs.at[R_BV, 0:H].set(params["bv"][0])
    vecs = vecs.at[R_BO, 0:H].set(params["bo"][0])
    vecs = vecs.at[R_G1, 0:H].set(params["g1"][0])
    vecs = vecs.at[R_B1, 0:H].set(params["b1"][0])
    vecs = vecs.at[R_BI, 0:I].set(params["bi"][0])
    vecs = vecs.at[R_BF, 0:H].set(params["bf"][0])
    vecs = vecs.at[R_G2, 0:H].set(params["g2"][0])
    vecs = vecs.at[R_B2, 0:H].set(params["b2"][0])
    vecs = vecs.at[R_BP, 0:H].set(params["bp"][0])
    vecs = vecs.at[R_BC, 0:C].set(params["bc"][0])
    feat = jnp.arange(H)
    for n in range(NUM_HEADS):           # 0/1 head-membership masks
        vecs = vecs.at[R_HM + n, 0:H].set((feat // DH == n).astype(jnp.float32))

    word_emb_pad = jnp.zeros((VOCAB_PAD, H), jnp.float32).at[:VOCAB].set(
        params["word_emb"])
    # (seq, batch)-major position embeddings: row s*B + b = pos_emb[s]
    pos_tiled = jnp.repeat(params["pos_emb"], B, axis=0)
    return word_emb_pad, pos_tiled, w_all, vecs


@jax.jit
def text_classifier_forward(input_ids, attention_mask, word_emb_pad, pos_tiled,
                            w_all, vecs):
    """input_ids, attention_mask: (B, S); packed params as from pack_params."""
    # (seq, batch)-major token rows -> CLS tokens are rows 0..B-1 in-kernel.
    ids2 = input_ids.T.reshape(T, 1).astype(jnp.int32)

    # Precomputed additive mask for the flattened (head*batch, token) scores:
    # keep only same-batch, non-padded tokens.  Token row j belongs to batch
    # j % B; score row r (head-major) belongs to batch r % B.
    r = jnp.arange(NUM_HEADS * B)
    j = jnp.arange(T)
    same_batch = (r[:, None] % B) == (j[None, :] % B)
    valid = attention_mask.T.reshape(-1)[None, :] > 0.5
    addmask = jnp.where(jnp.logical_and(same_batch, valid), 0.0, -1e9
                        ).astype(jnp.float32)

    vmem = pl.BlockSpec(memory_space=pltpu.MemorySpace.VMEM)
    logits_pad = pl.pallas_call(
        text_classifier_kernel,
        out_shape=jax.ShapeDtypeStruct((B, OUT_PAD), jnp.float32),
        in_specs=[vmem] * 6,
        out_specs=vmem,
    )(ids2, word_emb_pad, pos_tiled, addmask, w_all, vecs)
    return logits_pad[:, :C]


# --------------------------- deterministic params ----------------------------
def init_params(key):
    keys = jax.random.split(key, 12)

    def dense(k, fan_in, shape):
        return jax.random.normal(k, shape, jnp.float32) / math.sqrt(fan_in)

    return {
        "word_emb": dense(keys[0], H, (VOCAB, H)),
        "pos_emb": dense(keys[1], H, (S, H)),
        "wq": dense(keys[2], H, (H, H)), "bq": jnp.zeros((1, H), jnp.float32),
        "wk": dense(keys[3], H, (H, H)), "bk": jnp.zeros((1, H), jnp.float32),
        "wv": dense(keys[4], H, (H, H)), "bv": jnp.zeros((1, H), jnp.float32),
        "wo": dense(keys[5], H, (H, H)), "bo": jnp.zeros((1, H), jnp.float32),
        "g1": jnp.ones((1, H), jnp.float32), "b1": jnp.zeros((1, H), jnp.float32),
        "wi": dense(keys[6], H, (H, I)), "bi": jnp.zeros((1, I), jnp.float32),
        "wf": dense(keys[7], I, (I, H)), "bf": jnp.zeros((1, H), jnp.float32),
        "g2": jnp.ones((1, H), jnp.float32), "b2": jnp.zeros((1, H), jnp.float32),
        "wp": dense(keys[8], H, (H, H)), "bp": jnp.zeros((1, H), jnp.float32),
        "wc": dense(keys[9], H, (H, C)), "bc": jnp.zeros((1, C), jnp.float32),
    }


# ----------------------------------- main -------------------------------------
if __name__ == "__main__":
    key = jax.random.PRNGKey(0)
    k_params, k_ids, k_img = jax.random.split(key, 3)

    params = init_params(k_params)
    word_emb_pad, pos_tiled, w_all, vecs = pack_params(params)

    # text_inputs = {input_ids, attention_mask}
    input_ids = jax.random.randint(k_ids, (B, S), 0, VOCAB)
    attention_mask = jnp.ones((B, S), jnp.float32)

    # image_inputs is accepted by the original forward but unused.
    image_inputs = jax.random.normal(k_img, (B, 3, 16, 16), jnp.float32)
    del image_inputs  # not used by TextClassifier.forward

    logits = text_classifier_forward(input_ids, attention_mask,
                                     word_emb_pad, pos_tiled, w_all, vecs)
    logits = jax.block_until_ready(logits)

    assert logits.shape == (B, C) and logits.dtype == jnp.float32
    assert bool(jnp.all(jnp.isfinite(logits)))
    print("KERNEL_OK")
</pallas_src>

<mosaic_0001>
module attributes {stable_mosaic.version = 11 : i64} {
  func.func @text_classifier_kernel(%arg0: memref<16x1xi32, #tpu.memory_space<vmem>>, %arg1: memref<128x32xf32, #tpu.memory_space<vmem>>, %arg2: memref<16x32xf32, #tpu.memory_space<vmem>>, %arg3: memref<4x16xf32, #tpu.memory_space<vmem>>, %arg4: memref<64x1024xbf16, #tpu.memory_space<vmem>>, %arg5: memref<14x128xf32, #tpu.memory_space<vmem>>, %arg6: memref<2x128xf32, #tpu.memory_space<vmem>>) attributes {dimension_semantics = [], scalar_prefetch = 0 : i64, scratch_operands = 0 : i64, tpu.core_type = #tpu.core_type<tc>} {
    %c0 = arith.constant 0 : index
    %c0_0 = arith.constant 0 : index
    %0 = vector.load %arg0[%c0, %c0_0] : memref<16x1xi32, #tpu.memory_space<vmem>>, vector<16x1xi32>
    %1 = tpu.iota {dimensions = array<i32: 1>} : vector<16x128xi32>
    %2 = vector.broadcast %0 : vector<16x1xi32> to vector<16x128xi32>
    %3 = arith.cmpi eq, %1, %2 : vector<16x128xi32>
    %4 = arith.extui %3 : vector<16x128xi1> to vector<16x128xi32>
    %5 = arith.sitofp %4 : vector<16x128xi32> to vector<16x128xf32>
    %c0_1 = arith.constant 0 : index
    %c0_2 = arith.constant 0 : index
    %6 = vector.load %arg1[%c0_1, %c0_2] : memref<128x32xf32, #tpu.memory_space<vmem>>, vector<128x32xf32>
    %cst = arith.constant dense<0.000000e+00> : vector<16x32xf32>
    %7 = tpu.matmul %5, %6, %cst {dimension_numbers = #tpu.dot_dimension_numbers<[1], [0], [0], [1], [0, 0, 1, 1], [], []>} : vector<16x128xf32>, vector<128x32xf32>, vector<16x32xf32> -> vector<16x32xf32>
    %c0_3 = arith.constant 0 : index
    %c0_4 = arith.constant 0 : index
    %8 = vector.load %arg2[%c0_3, %c0_4] : memref<16x32xf32, #tpu.memory_space<vmem>>, vector<16x32xf32>
    %9 = arith.addf %7, %8 : vector<16x32xf32>
    %10 = arith.truncf %9 : vector<16x32xf32> to vector<16x32xbf16>
    %11 = vector.extract_strided_slice %9 {offsets = [0, 0], sizes = [2, 32], strides = [1, 1]} : vector<16x32xf32> to vector<2x32xf32>
    %c0_5 = arith.constant 0 : index
    %c0_6 = arith.constant 0 : index
    %12 = vector.load %arg4[%c0_5, %c0_6] : memref<64x1024xbf16, #tpu.memory_space<vmem>>, vector<32x32xbf16>
    %c0_7 = arith.constant 0 : index
    %c128 = arith.constant 128 : index
    %13 = vector.load %arg4[%c0_7, %c128] : memref<64x1024xbf16, #tpu.memory_space<vmem>>, vector<32x32xbf16>
    %c0_8 = arith.constant 0 : index
    %c256 = arith.constant 256 : index
    %14 = vector.load %arg4[%c0_8, %c256] : memref<64x1024xbf16, #tpu.memory_space<vmem>>, vector<32x32xbf16>
    %c0_9 = arith.constant 0 : index
    %c0_10 = arith.constant 0 : index
    %15 = vector.load %arg5[%c0_9, %c0_10] : memref<14x128xf32, #tpu.memory_space<vmem>>, vector<1x32xf32>
    %c1 = arith.constant 1 : index
    %c0_11 = arith.constant 0 : index
    %16 = vector.load %arg5[%c1, %c0_11] : memref<14x128xf32, #tpu.memory_space<vmem>>, vector<1x32xf32>
    %c2 = arith.constant 2 : index
    %c0_12 = arith.constant 0 : index
    %17 = vector.load %arg5[%c2, %c0_12] : memref<14x128xf32, #tpu.memory_space<vmem>>, vector<1x32xf32>
    %18 = vector.extract_strided_slice %10 {offsets = [0, 0], sizes = [2, 32], strides = [1, 1]} : vector<16x32xbf16> to vector<2x32xbf16>
    %cst_13 = arith.constant dense<0.000000e+00> : vector<2x32xf32>
    %19 = tpu.matmul %18, %12, %cst_13 {dimension_numbers = #tpu.dot_dimension_numbers<[1], [0], [0], [1], [0, 0, 1, 1], [], []>} : vector<2x32xbf16>, vector<32x32xbf16>, vector<2x32xf32> -> vector<2x32xf32>
    %20 = vector.broadcast %15 : vector<1x32xf32> to vector<2x32xf32>
    %21 = arith.addf %19, %20 : vector<2x32xf32>
    %cst_14 = arith.constant 2.500000e-01 : f32
    %22 = vector.broadcast %cst_14 : f32 to vector<2x32xf32>
    %23 = arith.mulf %21, %22 : vector<2x32xf32>
    %cst_15 = arith.constant dense<0.000000e+00> : vector<16x32xf32>
    %24 = tpu.matmul %10, %13, %cst_15 {dimension_numbers = #tpu.dot_dimension_numbers<[1], [0], [0], [1], [0, 0, 1, 1], [], []>} : vector<16x32xbf16>, vector<32x32xbf16>, vector<16x32xf32> -> vector<16x32xf32>
    %25 = vector.broadcast %16 : vector<1x32xf32> to vector<16x32xf32>
    %26 = arith.addf %24, %25 : vector<16x32xf32>
    %cst_16 = arith.constant dense<0.000000e+00> : vector<16x32xf32>
    %27 = tpu.matmul %10, %14, %cst_16 {dimension_numbers = #tpu.dot_dimension_numbers<[1], [0], [0], [1], [0, 0, 1, 1], [], []>} : vector<16x32xbf16>, vector<32x32xbf16>, vector<16x32xf32> -> vector<16x32xf32>
    %28 = vector.broadcast %17 : vector<1x32xf32> to vector<16x32xf32>
    %29 = arith.addf %27, %28 : vector<16x32xf32>
    %c12 = arith.constant 12 : index
    %c0_17 = arith.constant 0 : index
    %30 = vector.load %arg5[%c12, %c0_17] : memref<14x128xf32, #tpu.memory_space<vmem>>, vector<1x32xf32>
    %31 = vector.broadcast %30 : vector<1x32xf32> to vector<2x32xf32>
    %32 = arith.mulf %23, %31 : vector<2x32xf32>
    %c13 = arith.constant 13 : index
    %c0_18 = arith.constant 0 : index
    %33 = vector.load %arg5[%c13, %c0_18] : memref<14x128xf32, #tpu.memory_space<vmem>>, vector<1x32xf32>
    %34 = vector.broadcast %33 : vector<1x32xf32> to vector<2x32xf32>
    %35 = arith.mulf %23, %34 : vector<2x32xf32>
    %36 = tpu.concatenate %32, %35 in 0 : vector<2x32xf32>, vector<2x32xf32> -> vector<4x32xf32>
    %37 = arith.truncf %36 : vector<4x32xf32> to vector<4x32xbf16>
    %38 = arith.truncf %26 : vector<16x32xf32> to vector<16x32xbf16>
    %cst_19 = arith.constant dense<0.000000e+00> : vector<4x16xf32>
    %39 = tpu.matmul %37, %38, %cst_19 {dimension_numbers = #tpu.dot_dimension_numbers<[1], [1], [0], [0], [0, 0, 1, 0], [], []>} : vector<4x32xbf16>, vector<16x32xbf16>, vector<4x16xf32> -> vector<4x16xf32>
    %c0_20 = arith.constant 0 : index
    %c0_21 = arith.constant 0 : index
    %40 = vector.load %arg3[%c0_20, %c0_21] : memref<4x16xf32, #tpu.memory_space<vmem>>, vector<4x16xf32>
    %41 = arith.addf %39, %40 : vector<4x16xf32>
    %cst_22 = arith.constant dense<0xFF800000> : vector<4xf32>
    %42 = vector.multi_reduction <maximumf>, %41, %cst_22 [1] : vector<4x16xf32> to vector<4xf32>
    %43 = vector.shape_cast %42 : vector<4xf32> to vector<4x1xf32>
    %44 = vector.broadcast %43 : vector<4x1xf32> to vector<4x16xf32>
    %45 = arith.subf %41, %44 : vector<4x16xf32>
    %46 = math.exp %45 : vector<4x16xf32>
    %cst_23 = arith.constant dense<0.000000e+00> : vector<4xf32>
    %47 = vector.multi_reduction <add>, %46, %cst_23 [1] : vector<4x16xf32> to vector<4xf32>
    %48 = vector.shape_cast %47 : vector<4xf32> to vector<4x1xf32>
    %49 = tpu.reciprocal %48 : vector<4x1xf32> -> vector<4x1xf32>
    %50 = vector.broadcast %49 : vector<4x1xf32> to vector<4x16xf32>
    %51 = arith.mulf %46, %50 : vector<4x16xf32>
    %52 = arith.truncf %51 : vector<4x16xf32> to vector<4x16xbf16>
    %53 = arith.truncf %29 : vector<16x32xf32> to vector<16x32xbf16>
    %cst_24 = arith.constant dense<0.000000e+00> : vector<4x32xf32>
    %54 = tpu.matmul %52, %53, %cst_24 {dimension_numbers = #tpu.dot_dimension_numbers<[1], [0], [0], [1], [0, 0, 1, 1], [], []>} : vector<4x16xbf16>, vector<16x32xbf16>, vector<4x32xf32> -> vector<4x32xf32>
    %55 = vector.extract_strided_slice %54 {offsets = [0, 0], sizes = [2, 32], strides = [1, 1]} : vector<4x32xf32> to vector<2x32xf32>
    %c12_25 = arith.constant 12 : index
    %c0_26 = arith.constant 0 : index
    %56 = vector.load %arg5[%c12_25, %c0_26] : memref<14x128xf32, #tpu.memory_space<vmem>>, vector<1x32xf32>
    %57 = vector.broadcast %56 : vector<1x32xf32> to vector<2x32xf32>
    %58 = arith.mulf %55, %57 : vector<2x32xf32>
    %59 = vector.extract_strided_slice %54 {offsets = [2, 0], sizes = [2, 32], strides = [1, 1]} : vector<4x32xf32> to vector<2x32xf32>
    %c13_27 = arith.constant 13 : index
    %c0_28 = arith.constant 0 : index
    %60 = vector.load %arg5[%c13_27, %c0_28] : memref<14x128xf32, #tpu.memory_space<vmem>>, vector<1x32xf32>
    %61 = vector.broadcast %60 : vector<1x32xf32> to vector<2x32xf32>
    %62 = arith.mulf %59, %61 : vector<2x32xf32>
    %63 = arith.addf %58, %62 : vector<2x32xf32>
    %c0_29 = arith.constant 0 : index
    %c384 = arith.constant 384 : index
    %64 = vector.load %arg4[%c0_29, %c384] : memref<64x1024xbf16, #tpu.memory_space<vmem>>, vector<32x32xbf16>
    %c3 = arith.constant 3 : index
    %c0_30 = arith.constant 0 : index
    %65 = vector.load %arg5[%c3, %c0_30] : memref<14x128xf32, #tpu.memory_space<vmem>>, vector<1x32xf32>
    %66 = arith.truncf %63 : vector<2x32xf32> to vector<2x32xbf16>
    %cst_31 = arith.constant dense<0.000000e+00> : vector<2x32xf32>
    %67 = tpu.matmul %66, %64, %cst_31 {dimension_numbers = #tpu.dot_dimension_numbers<[1], [0], [0], [1], [0, 0, 1, 1], [], []>} : vector<2x32xbf16>, vector<32x32xbf16>, vector<2x32xf32> -> vector<2x32xf32>
    %68 = vector.broadcast %65 : vector<1x32xf32> to vector<2x32xf32>
    %69 = arith.addf %67, %68 : vector<2x32xf32>
    %c4 = arith.constant 4 : index
    %c0_32 = arith.constant 0 : index
    %70 = vector.load %arg5[%c4, %c0_32] : memref<14x128xf32, #tpu.memory_space<vmem>>, vector<1x32xf32>
    %c5 = arith.constant 5 : index
    %c0_33 = arith.constant 0 : index
    %71 = vector.load %arg5[%c5, %c0_33] : memref<14x128xf32, #tpu.memory_space<vmem>>, vector<1x32xf32>
    %72 = arith.addf %11, %69 : vector<2x32xf32>
    %cst_34 = arith.constant dense<0.000000e+00> : vector<2xf32>
    %73 = vector.multi_reduction <add>, %72, %cst_34 [1] : vector<2x32xf32> to vector<2xf32>
    %74 = vector.shape_cast %73 : vector<2xf32> to vector<2x1xf32>
    %cst_35 = arith.constant 3.200000e+01 : f32
    %75 = vector.broadcast %cst_35 : f32 to vector<2x1xf32>
    %76 = arith.divf %74, %75 : vector<2x1xf32>
    %77 = vector.broadcast %76 : vector<2x1xf32> to vector<2x32xf32>
    %78 = arith.subf %72, %77 : vector<2x32xf32>
    %79 = vector.broadcast %76 : vector<2x1xf32> to vector<2x32xf32>
    %80 = arith.subf %72, %79 : vector<2x32xf32>
    %81 = arith.mulf %78, %80 : vector<2x32xf32>
    %cst_36 = arith.constant dense<0.000000e+00> : vector<2xf32>
    %82 = vector.multi_reduction <add>, %81, %cst_36 [1] : vector<2x32xf32> to vector<2xf32>
    %83 = vector.shape_cast %82 : vector<2xf32> to vector<2x1xf32>
    %cst_37 = arith.constant 3.200000e+01 : f32
    %84 = vector.broadcast %cst_37 : f32 to vector<2x1xf32>
    %85 = arith.divf %83, %84 : vector<2x1xf32>
    %86 = vector.broadcast %76 : vector<2x1xf32> to vector<2x32xf32>
    %87 = arith.subf %72, %86 : vector<2x32xf32>
    %cst_38 = arith.constant 9.99999996E-13 : f32
    %88 = vector.broadcast %cst_38 : f32 to vector<2x1xf32>
    %89 = arith.addf %85, %88 : vector<2x1xf32>
    %90 = math.rsqrt %89 : vector<2x1xf32>
    %91 = vector.broadcast %90 : vector<2x1xf32> to vector<2x32xf32>
    %92 = arith.mulf %87, %91 : vector<2x32xf32>
    %93 = vector.broadcast %70 : vector<1x32xf32> to vector<2x32xf32>
    %94 = arith.mulf %92, %93 : vector<2x32xf32>
    %95 = vector.broadcast %71 : vector<1x32xf32> to vector<2x32xf32>
    %96 = arith.addf %94, %95 : vector<2x32xf32>
    %c0_39 = arith.constant 0 : index
    %c512 = arith.constant 512 : index
    %97 = vector.load %arg4[%c0_39, %c512] : memref<64x1024xbf16, #tpu.memory_space<vmem>>, vector<32x64xbf16>
    %c6 = arith.constant 6 : index
    %c0_40 = arith.constant 0 : index
    %98 = vector.load %arg5[%c6, %c0_40] : memref<14x128xf32, #tpu.memory_space<vmem>>, vector<1x64xf32>
    %99 = arith.truncf %96 : vector<2x32xf32> to vector<2x32xbf16>
    %cst_41 = arith.constant dense<0.000000e+00> : vector<2x64xf32>
    %100 = tpu.matmul %99, %97, %cst_41 {dimension_numbers = #tpu.dot_dimension_numbers<[1], [0], [0], [1], [0, 0, 1, 1], [], []>} : vector<2x32xbf16>, vector<32x64xbf16>, vector<2x64xf32> -> vector<2x64xf32>
    %101 = vector.broadcast %98 : vector<1x64xf32> to vector<2x64xf32>
    %102 = arith.addf %100, %101 : vector<2x64xf32>
    %cst_42 = arith.constant 5.000000e-01 : f32
    %103 = vector.broadcast %cst_42 : f32 to vector<2x64xf32>
    %104 = arith.mulf %103, %102 : vector<2x64xf32>
    %cst_43 = arith.constant 4.471500e-02 : f32
    %105 = vector.broadcast %cst_43 : f32 to vector<2x64xf32>
    %106 = arith.mulf %105, %102 : vector<2x64xf32>
    %107 = arith.mulf %106, %102 : vector<2x64xf32>
    %108 = arith.mulf %107, %102 : vector<2x64xf32>
    %109 = arith.addf %102, %108 : vector<2x64xf32>
    %cst_44 = arith.constant 0.797884583 : f32
    %110 = vector.broadcast %cst_44 : f32 to vector<2x64xf32>
    %111 = arith.mulf %110, %109 : vector<2x64xf32>
    %112 = math.tanh %111 : vector<2x64xf32>
    %cst_45 = arith.constant 1.000000e+00 : f32
    %113 = vector.broadcast %cst_45 : f32 to vector<2x64xf32>
    %114 = arith.addf %113, %112 : vector<2x64xf32>
    %115 = arith.mulf %104, %114 : vector<2x64xf32>
    %c0_46 = arith.constant 0 : index
    %c896 = arith.constant 896 : index
    %116 = vector.load %arg4[%c0_46, %c896] : memref<64x1024xbf16, #tpu.memory_space<vmem>>, vector<64x32xbf16>
    %c7 = arith.constant 7 : index
    %c0_47 = arith.constant 0 : index
    %117 = vector.load %arg5[%c7, %c0_47] : memref<14x128xf32, #tpu.memory_space<vmem>>, vector<1x32xf32>
    %118 = arith.truncf %115 : vector<2x64xf32> to vector<2x64xbf16>
    %cst_48 = arith.constant dense<0.000000e+00> : vector<2x32xf32>
    %119 = tpu.matmul %118, %116, %cst_48 {dimension_numbers = #tpu.dot_dimension_numbers<[1], [0], [0], [1], [0, 0, 1, 1], [], []>} : vector<2x64xbf16>, vector<64x32xbf16>, vector<2x32xf32> -> vector<2x32xf32>
    %120 = vector.broadcast %117 : vector<1x32xf32> to vector<2x32xf32>
    %121 = arith.addf %119, %120 : vector<2x32xf32>
    %c8 = arith.constant 8 : index
    %c0_49 = arith.constant 0 : index
    %122 = vector.load %arg5[%c8, %c0_49] : memref<14x128xf32, #tpu.memory_space<vmem>>, vector<1x32xf32>
    %c9 = arith.constant 9 : index
    %c0_50 = arith.constant 0 : index
    %123 = vector.load %arg5[%c9, %c0_50] : memref<14x128xf32, #tpu.memory_space<vmem>>, vector<1x32xf32>
    %124 = arith.addf %96, %121 : vector<2x32xf32>
    %cst_51 = arith.constant dense<0.000000e+00> : vector<2xf32>
    %125 = vector.multi_reduction <add>, %124, %cst_51 [1] : vector<2x32xf32> to vector<2xf32>
    %126 = vector.shape_cast %125 : vector<2xf32> to vector<2x1xf32>
    %cst_52 = arith.constant 3.200000e+01 : f32
    %127 = vector.broadcast %cst_52 : f32 to vector<2x1xf32>
    %128 = arith.divf %126, %127 : vector<2x1xf32>
    %129 = vector.broadcast %128 : vector<2x1xf32> to vector<2x32xf32>
    %130 = arith.subf %124, %129 : vector<2x32xf32>
    %131 = vector.broadcast %128 : vector<2x1xf32> to vector<2x32xf32>
    %132 = arith.subf %124, %131 : vector<2x32xf32>
    %133 = arith.mulf %130, %132 : vector<2x32xf32>
    %cst_53 = arith.constant dense<0.000000e+00> : vector<2xf32>
    %134 = vector.multi_reduction <add>, %133, %cst_53 [1] : vector<2x32xf32> to vector<2xf32>
    %135 = vector.shape_cast %134 : vector<2xf32> to vector<2x1xf32>
    %cst_54 = arith.constant 3.200000e+01 : f32
    %136 = vector.broadcast %cst_54 : f32 to vector<2x1xf32>
    %137 = arith.divf %135, %136 : vector<2x1xf32>
    %138 = vector.broadcast %128 : vector<2x1xf32> to vector<2x32xf32>
    %139 = arith.subf %124, %138 : vector<2x32xf32>
    %cst_55 = arith.constant 9.99999996E-13 : f32
    %140 = vector.broadcast %cst_55 : f32 to vector<2x1xf32>
    %141 = arith.addf %137, %140 : vector<2x1xf32>
    %142 = math.rsqrt %141 : vector<2x1xf32>
    %143 = vector.broadcast %142 : vector<2x1xf32> to vector<2x32xf32>
    %144 = arith.mulf %139, %143 : vector<2x32xf32>
    %145 = vector.broadcast %122 : vector<1x32xf32> to vector<2x32xf32>
    %146 = arith.mulf %144, %145 : vector<2x32xf32>
    %147 = vector.broadcast %123 : vector<1x32xf32> to vector<2x32xf32>
    %148 = arith.addf %146, %147 : vector<2x32xf32>
    %c0_56 = arith.constant 0 : index
    %c640 = arith.constant 640 : index
    %149 = vector.load %arg4[%c0_56, %c640] : memref<64x1024xbf16, #tpu.memory_space<vmem>>, vector<32x32xbf16>
    %c10 = arith.constant 10 : index
    %c0_57 = arith.constant 0 : index
    %150 = vector.load %arg5[%c10, %c0_57] : memref<14x128xf32, #tpu.memory_space<vmem>>, vector<1x32xf32>
    %151 = arith.truncf %148 : vector<2x32xf32> to vector<2x32xbf16>
    %cst_58 = arith.constant dense<0.000000e+00> : vector<2x32xf32>
    %152 = tpu.matmul %151, %149, %cst_58 {dimension_numbers = #tpu.dot_dimension_numbers<[1], [0], [0], [1], [0, 0, 1, 1], [], []>} : vector<2x32xbf16>, vector<32x32xbf16>, vector<2x32xf32> -> vector<2x32xf32>
    %153 = vector.broadcast %150 : vector<1x32xf32> to vector<2x32xf32>
    %154 = arith.addf %152, %153 : vector<2x32xf32>
    %155 = math.tanh %154 : vector<2x32xf32>
    %c0_59 = arith.constant 0 : index
    %c768 = arith.constant 768 : index
    %156 = vector.load %arg4[%c0_59, %c768] : memref<64x1024xbf16, #tpu.memory_space<vmem>>, vector<32x128xbf16>
    %c11 = arith.constant 11 : index
    %c0_60 = arith.constant 0 : index
    %157 = vector.load %arg5[%c11, %c0_60] : memref<14x128xf32, #tpu.memory_space<vmem>>, vector<1x128xf32>
    %158 = arith.truncf %155 : vector<2x32xf32> to vector<2x32xbf16>
    %cst_61 = arith.constant dense<0.000000e+00> : vector<2x128xf32>
    %159 = tpu.matmul %158, %156, %cst_61 {dimension_numbers = #tpu.dot_dimension_numbers<[1], [0], [0], [1], [0, 0, 1, 1], [], []>} : vector<2x32xbf16>, vector<32x128xbf16>, vector<2x128xf32> -> vector<2x128xf32>
    %160 = vector.broadcast %157 : vector<1x128xf32> to vector<2x128xf32>
    %161 = arith.addf %159, %160 : vector<2x128xf32>
    %c0_62 = arith.constant 0 : index
    %c0_63 = arith.constant 0 : index
    %162 = vector.load %arg6[%c0_62, %c0_63] : memref<2x128xf32, #tpu.memory_space<vmem>>, vector<2x128xf32>
    tpu.vector_store %arg6[%c0_62, %c0_63], %161 {strides = array<i32>} : memref<2x128xf32, #tpu.memory_space<vmem>>, vector<2x128xf32>,
    return
  }
}

</mosaic_0001>

<llo_original>
// kernel: text_classifier_forward.1
$region0: #{text_classifier_forward.1}
  #allocation0 [shape = 'u32[]', space=smem, size = 0x4, offset = 0x4, fixed_abs, tag = 'smem constant byte address 0x4 - core index']
  #allocation1 [shape = 'u32[72,128]{1,0:T(1,128)}', space=vmem, size = 0x9000, scoped, tag = 'internal scratch']
  %s0 = inlined_call_operand.vmem [shape: s32[16,1], index: 0, kind: input, shape index: {}]
  %s1 = inlined_call_operand.vmem [shape: f32[128,32], index: 1, kind: input, shape index: {}]
  %s2 = inlined_call_operand.vmem [shape: f32[16,32], index: 2, kind: input, shape index: {}]
  %s3 = inlined_call_operand.vmem [shape: f32[4,16], index: 3, kind: input, shape index: {}]
  %s4 = inlined_call_operand.hbm [shape: bf16[64,1024], index: 4, kind: input, shape index: {}]
  %s5 = inlined_call_operand.vmem [shape: f32[14,128], index: 5, kind: input, shape index: {}]
  %s6 = inlined_call_operand.hbm [shape: f32[2,128], index: 6, kind: output, shape index: {}]
  %s7 = sld [smem:[#allocation0]]
  $region38: #{text_classifier_forward.1} parent=0
    _
  %s9 = ssub.s32 1, %s7
  %s10 = scalar_select 0, %s9, %s7
  $region1: #{text_classifier_forward.1} parent=0
    #allocation2 [shape = 'u8[131072]{0}', space=vmem, size = 0x20000, scoped, tag = 'input window, operand 4, single buffered']
    #allocation3 [shape = 's32[1]{0}', space=sflag, size = 0x4, scoped, tag = 'scoped memory for text_classifier_forward.1']
    #allocation4 [shape = 's32[1]{0}', space=sflag, size = 0x4, scoped, tag = 'scoped memory for text_classifier_forward.1']
    #allocation5 [shape = 'u8[1024]{0}', space=vmem, size = 0x400, scoped, tag = 'output window, operand 0, single buffered']
    %11 = vsyncpa [#allocation3], 0
    %12 = vsyncpa [#allocation4], 0
    // Predicated region
    $region2: #{text_classifier_forward.1} parent=1 // pred_check
      _
    $region3: #{text_classifier_forward.1} parent=1 // pred_check_branch
      %14 = sbr.rel (0) target = $region5
    $region4: #{text_classifier_forward.1} parent=1 // pred_region
      _
    $region5: #{text_classifier_forward.1} parent=1 // pred_fallthru
      _
    // Predicated region
    $region6: #{text_classifier_forward.1} parent=1 // pred_check
      _
    $region7: #{text_classifier_forward.1} parent=1 // pred_check_branch
      %16 = sbr.rel (0) target = $region9
    $region8: #{text_classifier_forward.1} parent=1 // pred_region
      _
    $region9: #{text_classifier_forward.1} parent=1 // pred_fallthru
      _
    // Predicated region
    $region10: #{text_classifier_forward.1} parent=1 // pred_check
      _
    $region11: #{text_classifier_forward.1} parent=1 // pred_check_branch
      %18 = sbr.rel (0) target = $region13
    $region12: #{text_classifier_forward.1} parent=1 // pred_region
      _
    $region13: #{text_classifier_forward.1} parent=1 // pred_fallthru
      _
    // Predicated region
    $region14: #{text_classifier_forward.1} parent=1 // pred_check
      _
    $region15: #{text_classifier_forward.1} parent=1 // pred_check_branch
      %20 = sbr.rel (0) target = $region17
    $region16: #{text_classifier_forward.1} parent=1 // pred_region
      _
    $region17: #{text_classifier_forward.1} parent=1 // pred_fallthru
      _
    // Predicated region
    $region18: #{text_classifier_forward.1} parent=1 // pred_check
      _
    $region19: #{text_classifier_forward.1} parent=1 // pred_check_branch
      %22 = sbr.rel (0) target = $region21
    $region20: #{text_classifier_forward.1} parent=1 // pred_region
      %24 = vsyncadd [#allocation3], 0
      %s25 = sshll.u32 %s4, 4
      %s26 = int_to_ptr.hbm [resolvable:$true] %s25
      %s27 = sshll.u32 [#allocation2], 4
      %s28 = int_to_ptr.vmem [resolvable:$true] %s27
      %33 = dma.hbm_to_vmem [thread:$0]  %s26, 4096, %s28, [#allocation3], 512, 512, 32
    $region21: #{text_classifier_forward.1} parent=1 // pred_fallthru
      _
    // Predicated region
    $region22: #{text_classifier_forward.1} parent=1 // pred_check
      _
    $region23: #{text_classifier_forward.1} parent=1 // pred_check_branch
      %35 = sbr.rel (0) target = $region25
    $region24: #{text_classifier_forward.1} parent=1 // pred_region
      _
    $region25: #{text_classifier_forward.1} parent=1 // pred_fallthru
      _
    // Predicated region
    $region26: #{text_classifier_forward.1} parent=1 // pred_check
      _
    $region27: #{text_classifier_forward.1} parent=1 // pred_check_branch
      %37 = sbr.rel (0) target = $region29
    $region28: #{text_classifier_forward.1} parent=1 // pred_region
      %39 = dma.done [#allocation3], 4096
    $region29: #{text_classifier_forward.1} parent=1 // pred_fallthru
      _
    %v41 = vld [vmem:[%s0] sm:$0xff]
    %v42 = vld [vmem:[%s0 + $0x8] sm:$0xff]
    %v43 = vlaneseq
    %v44 = vand.u32 %v43, 127
    %45 = vset.pattern.permute.xlu0 0
    %46 = vperm.xlu0 %45, %v41
    %v47 = vpop.permute.xlu0 %46
    %48 = vset.pattern.permute.xlu0 0
    %49 = vperm.xlu0 %48, %v42
    %v50 = vpop.permute.xlu0 %49
    %vm51 = vcmp.eq.s32.totalorder %v44, %v47
    %vm52 = vcmp.eq.s32.totalorder %v44, %v50
    %v53 = vsel %vm51, 1, 0
    %v54 = vsel %vm52, 1, 0
    %v55 = vcvt.s32.f32 %v53
    %v56 = vcvt.s32.f32 %v54
    %v57 = vld [vmem:[%s1] sm:$0xff]
    %v58 = vld [vmem:[%s1 + $0x8] sm:$0xff]
    %v59 = vld [vmem:[%s1 + $0x10] sm:$0xff]
    %v60 = vld [vmem:[%s1 + $0x18] sm:$0xff]
    %v61 = vld [vmem:[%s1 + $0x20] sm:$0xff]
    %v62 = vld [vmem:[%s1 + $0x28] sm:$0xff]
    %v63 = vld [vmem:[%s1 + $0x30] sm:$0xff]
    %v64 = vld [vmem:[%s1 + $0x38] sm:$0xff]
    %v65 = vld [vmem:[%s1 + $0x40] sm:$0xff]
    %v66 = vld [vmem:[%s1 + $0x48] sm:$0xff]
    %v67 = vld [vmem:[%s1 + $0x50] sm:$0xff]
    %v68 = vld [vmem:[%s1 + $0x58] sm:$0xff]
    %v69 = vld [vmem:[%s1 + $0x60] sm:$0xff]
    %v70 = vld [vmem:[%s1 + $0x68] sm:$0xff]
    %v71 = vld [vmem:[%s1 + $0x70] sm:$0xff]
    %v72 = vld [vmem:[%s1 + $0x78] sm:$0xff]
    %v73 = vld [vmem:[%s2] sm:$0xff]
    %v74 = vld [vmem:[%s2 + $0x8] sm:$0xff]
    %75 = vmatpush.msra.mxu0 %v72
    %76 = vmatpush.msra.mxu0 %v71
    %77 = vmatpush.msra.mxu0 %v70
    %78 = vmatpush.msra.mxu0 %v69
    %79 = vmatpush.msra.mxu0 %v68
    %80 = vmatpush.msra.mxu0 %v67
    %81 = vmatpush.msra.mxu0 %v66
    %82 = vmatpush.msra.mxu0 %v65
    %83 = vmatpush.msra.mxu0 %v64
    %84 = vmatpush.msra.mxu0 %v63
    %85 = vmatpush.msra.mxu0 %v62
    %86 = vmatpush.msra.mxu0 %v61
    %87 = vmatpush.msra.mxu0 %v60
    %88 = vmatpush.msra.mxu0 %v59
    %89 = vmatpush.msra.mxu0 %v58
    %90 = vmatpush.msra.mxu0 %v57
    %91 = vmatmul.f32.gmra.mxu0 %v55
    %v92 = vpop.f32.mrf.mxu0
    %v93 = vadd.f32 %v73, %v92
    %94 = vmatmul.f32.gmra.mxu0 %v56
    %v95 = vpop.f32.mrf.mxu0
    %v96 = vadd.f32 %v74, %v95
    %97 = vdwg.mxu0
    %v98 = vpack.c.bf16 %v93, %v93
    %v99 = vpack.c.bf16 %v96, %v96
    %v100 = vld [vmem:[#allocation2] sm:$0xf]
    %v101 = vld [vmem:[#allocation2 + $0x20] sm:$0xf]
    %v102 = vld [vmem:[#allocation2 + $0x40] sm:$0xf]
    %v103 = vld [vmem:[#allocation2 + $0x60] sm:$0xf]
    %v104 = vld [vmem:[#allocation2 + $0x4] sm:$0xf]
    %v105 = vld [vmem:[#allocation2 + $0x24] sm:$0xf]
    %v106 = vld [vmem:[#allocation2 + $0x44] sm:$0xf]
    %v107 = vld [vmem:[#allocation2 + $0x64] sm:$0xf]
    %v108 = vld [vmem:[#allocation2 + $0x8] sm:$0xf]
    %v109 = vld [vmem:[#allocation2 + $0x28] sm:$0xf]
    %v110 = vld [vmem:[#allocation2 + $0x48] sm:$0xf]
    %v111 = vld [vmem:[#allocation2 + $0x68] sm:$0xf]
    %v112 = vld [vmem:[%s5] sm:$0x1]
    %v113 = vld [vmem:[%s5 + $0x1] sm:$0x1]
    %v114 = vld [vmem:[%s5 + $0x2] sm:$0x1]
    %v115 = vperm.slane %v112, 0
    %v120 = vunpack.c.l.b16 %v100
    %v121 = vunpack.c.l.b16 %v101
    %v122 = vunpack.c.l.b16 %v102
    %v123 = vunpack.c.l.b16 %v103
    %v124 = vpack.c.b16 %v121, %v120
    %v125 = vpack.c.b16 %v123, %v122
    %vm128 = vcmask 261120
    %v130 = vsel %vm128, %v98, 0
    %132 = vmatpush.bf16.msra.mxu0 0
    %133 = vmatpush.bf16.msra.mxu0 0
    %134 = vmatpush.bf16.msra.mxu0 0
    %135 = vmatpush.bf16.msra.mxu0 0
    %136 = vmatpush.bf16.msra.mxu0 0
    %137 = vmatpush.bf16.msra.mxu0 0
    %138 = vmatpush.bf16.msra.mxu0 %v125
    %139 = vmatpush.bf16.msra.mxu0 %v124
    %140 = vmatmul.bf16.gmra.mxu0 %v130
    %v141 = vpop.f32.mrf.mxu0
    %v142 = vadd.f32 %v115, %v141
    %v143 = vpop.f32.mrf.mxu0
    %144 = vdwg.mxu0
    %v145 = vmul.f32 %v142, 0.25
    %v146 = vperm.slane %v113, 0
    %v149 = vunpack.c.l.b16 %v98
    %v150 = vunpack.c.l.b16 %v99
    %v151 = vpack.c.b16 %v150, %v149
    %v156 = vunpack.c.l.b16 %v104
    %v157 = vunpack.c.l.b16 %v105
    %v158 = vunpack.c.l.b16 %v106
    %v159 = vunpack.c.l.b16 %v107
    %v160 = vpack.c.b16 %v157, %v156
    %v161 = vpack.c.b16 %v159, %v158
    %v165 = vsel %vm128, %v151, 0
    %167 = vmatpush.bf16.msra.mxu0 0
    %168 = vmatpush.bf16.msra.mxu0 0
    %169 = vmatpush.bf16.msra.mxu0 0
    %170 = vmatpush.bf16.msra.mxu0 0
    %171 = vmatpush.bf16.msra.mxu0 0
    %172 = vmatpush.bf16.msra.mxu0 0
    %173 = vmatpush.bf16.msra.mxu0 %v161
    %174 = vmatpush.bf16.msra.mxu0 %v160
    %175 = vmatmul.bf16.gmra.mxu0 %v165
    %v176 = vpop.f32.mrf.mxu0
    %v177 = vadd.f32 %v146, %v176
    %v178 = vpop.f32.mrf.mxu0
    %v179 = vadd.f32 %v146, %v178
    %180 = vdwg.mxu0
    %v181 = vperm.slane %v114, 0
    %v186 = vunpack.c.l.b16 %v108
    %v187 = vunpack.c.l.b16 %v109
    %v188 = vunpack.c.l.b16 %v110
    %v189 = vunpack.c.l.b16 %v111
    %v190 = vpack.c.b16 %v187, %v186
    %v191 = vpack.c.b16 %v189, %v188
    %194 = vmatpush.bf16.msra.mxu0 0
    %195 = vmatpush.bf16.msra.mxu0 0
    %196 = vmatpush.bf16.msra.mxu0 0
    %197 = vmatpush.bf16.msra.mxu0 0
    %198 = vmatpush.bf16.msra.mxu0 0
    %199 = vmatpush.bf16.msra.mxu0 0
    %200 = vmatpush.bf16.msra.mxu0 %v191
    %201 = vmatpush.bf16.msra.mxu0 %v190
    %202 = vmatmul.bf16.gmra.mxu0 %v165
    %v203 = vpop.f32.mrf.mxu0
    %v204 = vadd.f32 %v181, %v203
    %v205 = vpop.f32.mrf.mxu0
    %v206 = vadd.f32 %v181, %v205
    %207 = vdwg.mxu0
    %v208 = vld [vmem:[%s5 + $0xc] sm:$0x1]
    %v209 = vperm.slane %v208, 0
    %v210 = vmul.f32 %v145, %v209
    %v211 = vld [vmem:[%s5 + $0xd] sm:$0x1]
    %v212 = vperm.slane %v211, 0
    %v213 = vmul.f32 %v145, %v212
    %v215 = vrot.slane %v213, 6
    %vm217 = vcmask 1041408
    %v218 = vsel %vm217, %v210, %v215
    %v219 = vpack.c.bf16 %v218, %v218
    %v220 = vpack.c.bf16 %v179, %v177
    %v221 = vld [vmem:[%s3] sm:$0xf]
    %v223 = vsel %vm128, %v219, 0
    %v226 = vsel %vm128, %v220, 0
    %228 = vmatpush.bf16.xpose.msra.mxu0 0
    %229 = vmatpush.bf16.xpose.msra.mxu0 0
    %230 = vmatpush.bf16.xpose.msra.mxu0 0
    %231 = vmatpush.bf16.xpose.msra.mxu0 0
    %232 = vmatpush.bf16.xpose.msra.mxu0 0
    %233 = vmatpush.bf16.xpose.msra.mxu0 0
    %234 = vmatpush.bf16.xpose.msra.mxu0 0
    %235 = vmatpush.bf16.xpose.msra.mxu0 %v226
    %236 = vmatmul.bf16.gmra.mxu0 %v223
    %v237 = vpop.f32.mrf.mxu0
    %v238 = vadd.f32 %v221, %v237
    %v239 = vpop.f32.mrf.mxu0
    %240 = vdwg.mxu0
    %vm241 = vcmask 125952
    %v242 = vsel %vm241, %v238, -inf
    %243 = vmax.xlane.f32.xlu0 %v242
    %v244 = vpop.xlane.xlu0 %243
    %v245 = vsub.f32 %v238, %v244
    %v246 = vmul.f32 %v245, 1.442695
    %v247 = vpow.pop %v246
    %v248 = vsel %vm241, %v247, 0.0
    %249 = vadd.xlane.f32.xlu0 %v248
    %v250 = vpop.xlane.xlu0 %249
    %v251 = vrcp.pop %v250
    %v252 = vmul.f32 %v250, %v251
    %v253 = vsub.f32 1.0, %v252
    %v254 = vmul.f32 %v251, %v253
    %v255 = vadd.f32 %v251, %v254
    %vm256 = vweird.f32 %v250
    %vm257 = vweird.f32 %v251
    %vm258 = vmor %vm256, %vm257
    %v259 = vsel %vm258, %v251, %v255
    %v260 = vand.u32 2147483647, %v250
    %vm261 = vcmp.eq.f32.partialorder %v260, 8.507059e+37
    %v262 = vand.u32 %v250, 2147483648
    %v263 = vor.u32 1.1754944e-38, %v262
    %v264 = vsel %vm261, %v263, %v259
    %v265 = vmul.f32 %v247, %v264
    %v266 = vpack.c.bf16 %v265, %v265
    %v267 = vpack.c.bf16 %v206, %v204
    %vm268 = vcmask 130048
    %v270 = vsel %vm268, %v266, 0
    %272 = vmatpush.bf16.msra.mxu0 0
    %273 = vmatpush.bf16.msra.mxu0 0
    %274 = vmatpush.bf16.msra.mxu0 0
    %275 = vmatpush.bf16.msra.mxu0 0
    %276 = vmatpush.bf16.msra.mxu0 0
    %277 = vmatpush.bf16.msra.mxu0 0
    %278 = vmatpush.bf16.msra.mxu0 0
    %279 = vmatpush.bf16.msra.mxu0 %v267
    %280 = vmatmul.bf16.gmra.mxu0 %v270
    %v281 = vpop.f32.mrf.mxu0
    %v282 = vadd.f32 0.0, %v281
    %v283 = vpop.f32.mrf.mxu0
    %284 = vdwg.mxu0
    %v285 = vmul.f32 %v282, %v209
    %v286 = vmul.f32 %v282, %v212
    %v288 = vrot.slane %v286, 2
    %v290 = vadd.f32 %v285, %v288
    %v291 = vld [vmem:[#allocation2 + $0xc] sm:$0xf]
    %v292 = vld [vmem:[#allocation2 + $0x2c] sm:$0xf]
    %v293 = vld [vmem:[#allocation2 + $0x4c] sm:$0xf]
    %v294 = vld [vmem:[#allocation2 + $0x6c] sm:$0xf]
    %v295 = vld [vmem:[%s5 + $0x3] sm:$0x1]
    %v296 = vpack.c.bf16 %v290, %v290
    %v297 = vperm.slane %v295, 0
    %v302 = vunpack.c.l.b16 %v291
    %v303 = vunpack.c.l.b16 %v292
    %v304 = vunpack.c.l.b16 %v293
    %v305 = vunpack.c.l.b16 %v294
    %v306 = vpack.c.b16 %v303, %v302
    %v307 = vpack.c.b16 %v305, %v304
    %v311 = vsel %vm128, %v296, 0
    %313 = vmatpush.bf16.msra.mxu0 0
    %314 = vmatpush.bf16.msra.mxu0 0
    %315 = vmatpush.bf16.msra.mxu0 0
    %316 = vmatpush.bf16.msra.mxu0 0
    %317 = vmatpush.bf16.msra.mxu0 0
    %318 = vmatpush.bf16.msra.mxu0 0
    %319 = vmatpush.bf16.msra.mxu0 %v307
    %320 = vmatpush.bf16.msra.mxu0 %v306
    %321 = vmatmul.bf16.gmra.mxu0 %v311
    %v322 = vpop.f32.mrf.mxu0
    %v323 = vadd.f32 %v297, %v322
    %v324 = vpop.f32.mrf.mxu0
    %325 = vdwg.mxu0
    %v326 = vld [vmem:[%s5 + $0x4] sm:$0x1]
    %v327 = vld [vmem:[%s5 + $0x5] sm:$0x1]
    %v328 = vadd.f32 %v93, %v323
    %vm329 = vcmask 254976
    %v330 = vsel %vm329, %v328, 0.0
    %331 = vadd.xlane.f32.xlu0 %v330
    %v332 = vpop.xlane.xlu0 %331
    %v333 = vrcp.pop 32.0
    %v334 = vmul.f32 32.0, %v333
    %v335 = vsub.f32 1.0, %v334
    %v336 = vmul.f32 %v333, %v335
    %v337 = vadd.f32 %v333, %v336
    %vm338 = vweird.f32 %v333
    %v339 = vsel %vm338, %v333, %v337
    %v340 = vmul.f32 %v332, %v339
    %v341 = vsub.f32 %v328, %v340
    %v342 = vmul.f32 %v341, %v341
    %v343 = vsel %vm329, %v342, 0.0
    %344 = vadd.xlane.f32.xlu0 %v343
    %v345 = vpop.xlane.xlu0 %344
    %v346 = vmul.f32 %v345, %v339
    %v347 = vadd.f32 %v346, 1e-12
    %v348 = vrsqrt.pop %v347
    %v349 = vmul.f32 %v348, %v347
    %v350 = vmul.f32 %v349, %v348
    %v351 = vmul.f32 0.5, %v350
    %v352 = vsub.f32 1.5, %v351
    %v353 = vmul.f32 %v348, %v352
    %vm354 = vweird.f32 %v347
    %vm355 = vweird.f32 %v348
    %vm356 = vmor %vm354, %vm355
    %v357 = vsel %vm356, %v348, %v353
    %v358 = vmul.f32 %v341, %v357
    %v359 = vperm.slane %v326, 0
    %v360 = vmul.f32 %v358, %v359
    %v361 = vperm.slane %v327, 0
    %v362 = vadd.f32 %v360, %v361
    %v363 = vld [vmem:[#allocation2 + $0x10] sm:$0xf]
    %v364 = vld [vmem:[#allocation2 + $0x30] sm:$0xf]
    %v365 = vld [vmem:[#allocation2 + $0x50] sm:$0xf]
    %v366 = vld [vmem:[#allocation2 + $0x70] sm:$0xf]
    %v367 = vld [vmem:[%s5 + $0x6] sm:$0x1]
    %v368 = vpack.c.bf16 %v362, %v362
    %v369 = vperm.slane %v367, 0
    %v374 = vunpack.c.l.b16 %v363
    %v375 = vunpack.c.l.b16 %v364
    %v376 = vunpack.c.l.b16 %v365
    %v377 = vunpack.c.l.b16 %v366
    %v378 = vpack.c.b16 %v375, %v374
    %v379 = vpack.c.b16 %v377, %v376
    %v383 = vsel %vm128, %v368, 0
    %385 = vmatpush.bf16.msra.mxu0 0
    %386 = vmatpush.bf16.msra.mxu0 0
    %387 = vmatpush.bf16.msra.mxu0 0
    %388 = vmatpush.bf16.msra.mxu0 0
    %389 = vmatpush.bf16.msra.mxu0 0
    %390 = vmatpush.bf16.msra.mxu0 0
    %391 = vmatpush.bf16.msra.mxu0 %v379
    %392 = vmatpush.bf16.msra.mxu0 %v378
    %393 = vmatmul.bf16.gmra.mxu0 %v383
    %v394 = vpop.f32.mrf.mxu0
    %v395 = vadd.f32 %v369, %v394
    %v396 = vpop.f32.mrf.mxu0
    %397 = vdwg.mxu0
    %v398 = vmul.f32 %v395, 0.5
    %v399 = vmul.f32 %v395, 0.044715
    %v400 = vmul.f32 %v399, %v395
    %v401 = vmul.f32 %v400, %v395
    %v402 = vadd.f32 %v395, %v401
    %v403 = vmul.f32 %v402, 0.7978846
    %v404 = vtanh.pop %v403
    %v405 = vadd.f32 %v404, 1.0
    %v406 = vmul.f32 %v398, %v405
    %v407 = vld [vmem:[#allocation2 + $0x1c] sm:$0xf]
    %v408 = vld [vmem:[#allocation2 + $0x3c] sm:$0xf]
    %v409 = vld [vmem:[#allocation2 + $0x5c] sm:$0xf]
    %v410 = vld [vmem:[#allocation2 + $0x7c] sm:$0xf]
    %v411 = vld [vmem:[#allocation2 + $0x9c] sm:$0xf]
    %v412 = vld [vmem:[#allocation2 + $0xbc] sm:$0xf]
    %v413 = vld [vmem:[#allocation2 + $0xdc] sm:$0xf]
    %v414 = vld [vmem:[#allocation2 + $0xfc] sm:$0xf]
    %v415 = vld [vmem:[%s5 + $0x7] sm:$0x1]
    %v416 = vpack.c.bf16 %v406, %v406
    %v417 = vperm.slane %v415, 0
    %v426 = vunpack.c.l.b16 %v407
    %v427 = vunpack.c.l.b16 %v408
    %v428 = vunpack.c.l.b16 %v409
    %v429 = vunpack.c.l.b16 %v410
    %v430 = vunpack.c.l.b16 %v411
    %v431 = vunpack.c.l.b16 %v412
    %v432 = vunpack.c.l.b16 %v413
    %v433 = vunpack.c.l.b16 %v414
    %v434 = vpack.c.b16 %v427, %v426
    %v435 = vpack.c.b16 %v429, %v428
    %v436 = vpack.c.b16 %v431, %v430
    %v437 = vpack.c.b16 %v433, %v432
    %vm442 = vcmask 523264
    %v444 = vsel %vm442, %v416, 0
    %446 = vmatpush.bf16.msra.mxu0 0
    %447 = vmatpush.bf16.msra.mxu0 0
    %448 = vmatpush.bf16.msra.mxu0 0
    %449 = vmatpush.bf16.msra.mxu0 0
    %450 = vmatpush.bf16.msra.mxu0 %v437
    %451 = vmatpush.bf16.msra.mxu0 %v436
    %452 = vmatpush.bf16.msra.mxu0 %v435
    %453 = vmatpush.bf16.msra.mxu0 %v434
    %454 = vmatmul.bf16.gmra.mxu0 %v444
    %v455 = vpop.f32.mrf.mxu0
    %v456 = vadd.f32 %v417, %v455
    %v457 = vpop.f32.mrf.mxu0
    %458 = vdwg.mxu0
    %v459 = vld [vmem:[%s5 + $0x8] sm:$0x1]
    %v460 = vld [vmem:[%s5 + $0x9] sm:$0x1]
    %v461 = vadd.f32 %v362, %v456
    %v462 = vsel %vm329, %v461, 0.0
    %463 = vadd.xlane.f32.xlu0 %v462
    %v464 = vpop.xlane.xlu0 %463
    %v465 = vmul.f32 %v464, %v339
    %v466 = vsub.f32 %v461, %v465
    %v467 = vmul.f32 %v466, %v466
    %v468 = vsel %vm329, %v467, 0.0
    %469 = vadd.xlane.f32.xlu0 %v468
    %v470 = vpop.xlane.xlu0 %469
    %v471 = vmul.f32 %v470, %v339
    %v472 = vadd.f32 %v471, 1e-12
    %v473 = vrsqrt.pop %v472
    %v474 = vmul.f32 %v473, %v472
    %v475 = vmul.f32 %v474, %v473
    %v476 = vmul.f32 0.5, %v475
    %v477 = vsub.f32 1.5, %v476
    %v478 = vmul.f32 %v473, %v477
    %vm479 = vweird.f32 %v472
    %vm480 = vweird.f32 %v473
    %vm481 = vmor %vm479, %vm480
    %v482 = vsel %vm481, %v473, %v478
    %v483 = vmul.f32 %v466, %v482
    %v484 = vperm.slane %v459, 0
    %v485 = vmul.f32 %v483, %v484
    %v486 = vperm.slane %v460, 0
    %v487 = vadd.f32 %v485, %v486
    %v488 = vld [vmem:[#allocation2 + $0x14] sm:$0xf]
    %v489 = vld [vmem:[#allocation2 + $0x34] sm:$0xf]
    %v490 = vld [vmem:[#allocation2 + $0x54] sm:$0xf]
    %v491 = vld [vmem:[#allocation2 + $0x74] sm:$0xf]
    %v492 = vld [vmem:[%s5 + $0xa] sm:$0x1]
    %v493 = vpack.c.bf16 %v487, %v487
    %v494 = vperm.slane %v492, 0
    %v499 = vunpack.c.l.b16 %v488
    %v500 = vunpack.c.l.b16 %v489
    %v501 = vunpack.c.l.b16 %v490
    %v502 = vunpack.c.l.b16 %v491
    %v503 = vpack.c.b16 %v500, %v499
    %v504 = vpack.c.b16 %v502, %v501
    %v508 = vsel %vm128, %v493, 0
    %510 = vmatpush.bf16.msra.mxu0 0
    %511 = vmatpush.bf16.msra.mxu0 0
    %512 = vmatpush.bf16.msra.mxu0 0
    %513 = vmatpush.bf16.msra.mxu0 0
    %514 = vmatpush.bf16.msra.mxu0 0
    %515 = vmatpush.bf16.msra.mxu0 0
    %516 = vmatpush.bf16.msra.mxu0 %v504
    %517 = vmatpush.bf16.msra.mxu0 %v503
    %518 = vmatmul.bf16.gmra.mxu0 %v508
    %v519 = vpop.f32.mrf.mxu0
    %v520 = vadd.f32 %v494, %v519
    %v521 = vpop.f32.mrf.mxu0
    %522 = vdwg.mxu0
    %v523 = vtanh.pop %v520
    %v524 = vld [vmem:[#allocation2 + $0x18] sm:$0xf]
    %v525 = vld [vmem:[#allocation2 + $0x38] sm:$0xf]
    %v526 = vld [vmem:[#allocation2 + $0x58] sm:$0xf]
    %v527 = vld [vmem:[#allocation2 + $0x78] sm:$0xf]
    %v528 = vld [vmem:[%s5 + $0xb] sm:$0x1]
    %v529 = vpack.c.bf16 %v523, %v523
    %v530 = vperm.slane %v528, 0
    %v535 = vunpack.c.l.b16 %v524
    %v536 = vunpack.c.l.b16 %v525
    %v537 = vunpack.c.l.b16 %v526
    %v538 = vunpack.c.l.b16 %v527
    %v539 = vpack.c.b16 %v536, %v535
    %v540 = vpack.c.b16 %v538, %v537
    %v544 = vsel %vm128, %v529, 0
    %546 = vmatpush.bf16.msra.mxu0 0
    %547 = vmatpush.bf16.msra.mxu0 0
    %548 = vmatpush.bf16.msra.mxu0 0
    %549 = vmatpush.bf16.msra.mxu0 0
    %550 = vmatpush.bf16.msra.mxu0 0
    %551 = vmatpush.bf16.msra.mxu0 0
    %552 = vmatpush.bf16.msra.mxu0 %v540
    %553 = vmatpush.bf16.msra.mxu0 %v539
    %554 = vmatmul.bf16.gmra.mxu0 %v544
    %v555 = vpop.f32.mrf.mxu0
    %v556 = vadd.f32 %v530, %v555
    %v557 = vpop.f32.mrf.mxu0
    %558 = vdwg.mxu0
    %559 = vst [vmem:[#allocation5] sm:$0x3] %v556
    // Predicated region
    $region30: #{text_classifier_forward.1} parent=1 // pred_check
      _
    $region31: #{text_classifier_forward.1} parent=1 // pred_check_branch
      %561 = sbr.rel (0) target = $region33
    $region32: #{text_classifier_forward.1} parent=1 // pred_region
      %563 = vsyncadd [#allocation4], 0
      %s565 = sshll.u32 [#allocation5], 4
      %s566 = int_to_ptr.vmem [resolvable:$true] %s565
      %s567 = sshll.u32 %s6, 4
      %s568 = int_to_ptr.hbm [resolvable:$true] %s567
      %570 = dma.vmem_to_hbm [thread:$0]  %s566, 32, %s568, [#allocation4]
    $region33: #{text_classifier_forward.1} parent=1 // pred_fallthru
      _
    // Predicated region
    $region34: #{text_classifier_forward.1} parent=1 // pred_check
      _
    $region35: #{text_classifier_forward.1} parent=1 // pred_check_branch
      %572 = sbr.rel (0) target = $region37
    $region36: #{text_classifier_forward.1} parent=1 // pred_region
      %574 = dma.done [#allocation4], 32
    $region37: #{text_classifier_forward.1} parent=1 // pred_fallthru
      _
    %575 = vsyncpa [#allocation3], 1
    %576 = vsyncpa [#allocation4], 1

</llo_original>
